<compile_context>
chip_gen: v7x
topology: tpu7x:2x2x1
jax: 0.10.0
libtpu: 0.0.40
codegen_flags: <defaults>
</compile_context>

<pallas_src>
import jax
import jax.numpy as jnp
from jax.experimental import pallas as pl
from jax.experimental.pallas import tpu as pltpu

_MAX_BLOCK_ELEMS = 512 * 512        # ~1 MiB of f32 per input block (v5e-safe, DMA-efficient)
_LANE_CANDIDATES = (512, 256, 128)  # lane widths tried for a zero-copy reshape


def _make_kernel(rb, lanes, cps, num_chunks, hw, needs_tail_mask):
    """Build the per-chunk accumulation kernel (all args are trace-time constants)."""
    acc_rows = 8 if rb % 8 == 0 else 1

    def _fold(v):
        # (rb, lanes) -> (acc_rows, lanes) partial sums using only sublane-aligned
        # slices + vreg adds (no per-step intra-vreg sublane reduction).
        if acc_rows == 1:
            return jnp.sum(v, axis=0, keepdims=True)
        parts = [v[g * 8:(g + 1) * 8, :] for g in range(rb // 8)]
        while len(parts) > 1:
            nxt = [parts[i] + parts[i + 1] for i in range(0, len(parts) - 1, 2)]
            if len(parts) % 2 == 1:
                nxt.append(parts[-1])
            parts = nxt
        return parts[0]

    def kernel(x_ref, t_ref, sp_ref, st_ref, i1_ref):
        s = pl.program_id(0)           # megacore split
        k = pl.program_id(2)           # chunk within split (reduction axis)
        chunk = s * cps + k            # global spatial chunk index

        @pl.when(k == 0)
        def _():
            sp_ref[...] = jnp.zeros(sp_ref.shape, sp_ref.dtype)
            st_ref[...] = jnp.zeros(st_ref.shape, st_ref.dtype)
            i1_ref[...] = jnp.zeros(i1_ref.shape, i1_ref.dtype)

        def accumulate(mask_tail):
            x = x_ref[0].astype(jnp.float32)       # (rb, lanes); bf16 upcast happens here
            t = t_ref[0]                           # (rb, lanes) integer labels
            # softmax over classes [1-x, x] -> p1 = sigmoid(2x-1) = 0.5*tanh(x-0.5)+0.5
            # (a single EUP tanh; no divide / Newton-Raphson on the VPU).
            p1 = 0.5 * jnp.tanh(x - 0.5) + 0.5
            m1 = t == 1                            # labels in {0,1} (torch scatter_ contract)
            if mask_tail:
                rows = jax.lax.broadcasted_iota(jnp.int32, (rb, lanes), 0)
                cols = jax.lax.broadcasted_iota(jnp.int32, (rb, lanes), 1)
                flat = (chunk * rb + rows) * lanes + cols
                valid = flat < hw                  # hides pad values & stale OOB rows
                p1 = jnp.where(valid, p1, 0.0)
                m1 = jnp.logical_and(m1, valid)
            t1 = m1.astype(jnp.float32)
            pt1 = jnp.where(m1, p1, 0.0)           # p1 * t1 without a full-tile multiply
            sp_ref[0, 0] += _fold(p1)
            st_ref[0, 0] += _fold(t1)
            i1_ref[0, 0] += _fold(pt1)

        if needs_tail_mask:
            @pl.when(chunk == num_chunks - 1)
            def _():
                accumulate(True)

            @pl.when(chunk != num_chunks - 1)
            def _():
                accumulate(False)
        else:
            accumulate(False)

    return kernel, acc_rows


def iou_loss(inputs, target, weight=None, n_classes=2,
             max_block_elems=_MAX_BLOCK_ELEMS):
    """Pallas implementation of IoULoss.forward.

    inputs: (N, 1, H, W) or (N, H, W) probability map of class 1 (float32 or bfloat16).
    target: (N, H, W) integer labels in [0, n_classes).
    """
    assert n_classes == 2, "kernel specialized for the module's default n_classes=2"
    if weight is None:
        weight = jnp.array([1.0, 1.0], dtype=jnp.float32)

    x2 = inputs[:, 0, :, :] if inputs.ndim == 4 else inputs
    N, H, W = x2.shape
    HW = H * W

    x_flat = x2.reshape(N, HW)
    if not jnp.issubdtype(x_flat.dtype, jnp.floating):
        x_flat = x_flat.astype(jnp.float32)
    t_flat = target.reshape(N, HW)
    if not jnp.issubdtype(t_flat.dtype, jnp.integer):
        t_flat = t_flat.astype(jnp.int32)

    # Lane width: the widest of 512/256/128 dividing HW reshapes zero-copy and the
    # kernel consumes the caller's arrays (native dtypes) directly.  Only a truly
    # ragged HW pays for a pad copy; since that copy is made anyway the labels are
    # compacted to int8 there to cut the kernel's HBM read.
    L = next((c for c in _LANE_CANDIDATES if HW % c == 0), None)
    if L is None:
        L = _LANE_CANDIDATES[0]
        HW_pad = (-(-HW // L)) * L
        x_flat = jnp.pad(x_flat, ((0, 0), (0, HW_pad - HW)))   # pad values masked in-kernel
        t_flat = jnp.pad(t_flat.astype(jnp.int8), ((0, 0), (0, HW_pad - HW)))
    else:
        HW_pad = HW

    R = HW_pad // L
    Rb = min(R, max(1, max_block_elems // L))
    if Rb < R:
        # Sub-full blocks must satisfy every operand's min tile
        # (f32/int32: 8 rows, bf16: 16, int8: 32) -> round rows to a multiple of 32.
        Rb = max(32, (Rb // 32) * 32)
        Rb = min(Rb, R)
    num_chunks = -(-R // Rb)
    needs_tail_mask = (num_chunks * Rb * L) != HW

    # Megacore (v7x): a leading parallel axis independent of N keeps both TensorCores
    # busy even for a single large image; partials are summed in the epilogue.
    n_splits = 2 if num_chunks % 2 == 0 else 1
    cps = num_chunks // n_splits

    kernel, A = _make_kernel(Rb, L, cps, num_chunks, HW, needs_tail_mask)

    x3 = x_flat.reshape(N, R, L)
    t3 = t_flat.reshape(N, R, L)

    x_spec = pl.BlockSpec((1, Rb, L), lambda s, b, k: (b, s * cps + k, 0))
    t_spec = pl.BlockSpec((1, Rb, L), lambda s, b, k: (b, s * cps + k, 0))
    out_spec = pl.BlockSpec((1, 1, A, L), lambda s, b, k: (s, b, 0, 0))
    out_shape = jax.ShapeDtypeStruct((n_splits, N, A, L), jnp.float32)

    sp, st, i1 = pl.pallas_call(
        kernel,
        out_shape=(out_shape, out_shape, out_shape),
        grid_spec=pltpu.PrefetchScalarGridSpec(
            num_scalar_prefetch=0,
            grid=(n_splits, N, cps),
            in_specs=[x_spec, t_spec],
            out_specs=(out_spec, out_spec, out_spec),
        ),
        compiler_params=pltpu.CompilerParams(
            dimension_semantics=("parallel", "parallel", "arbitrary"),
            vmem_limit_bytes=32 * 1024 * 1024,
        ),
    )(x3, t3)

    # Tiny plain-JAX epilogue: reduce split/sublane/lane partials and apply the
    # 2-class identities (labels in {0,1} => one-hot of class 0 is 1 - t1).
    s_p = jnp.sum(sp, axis=(0, 2, 3))     # sum(p1)        (N,)
    s_t = jnp.sum(st, axis=(0, 2, 3))     # sum(t1)        (N,)
    i_1 = jnp.sum(i1, axis=(0, 2, 3))     # sum(p1 * t1)   (N,)

    hw = jnp.float32(HW)
    inter0 = hw - s_p - s_t + i_1         # sum(p0 * t0)
    inter1 = i_1
    union0 = hw - i_1                     # sum(p0 + t0 - p0*t0)
    union1 = s_p + s_t - i_1              # sum(p1 + t1 - p1*t1)

    inter = jnp.stack([inter0, inter1], axis=1)   # (N, 2)
    union = jnp.stack([union0, union1], axis=1)   # (N, 2)

    w = jnp.asarray(weight, jnp.float32) ** 2     # module stores weight * weight
    loss = (w * inter) / (w * union + 1e-8)
    return -jnp.mean(loss)


def iou_loss_ref(inputs, target, weight=None, n_classes=2):
    """Pure-JAX reference mirroring the PyTorch forward, for verification."""
    if weight is None:
        weight = jnp.array([1.0, 1.0], dtype=jnp.float32)
    N = inputs.shape[0]
    x = inputs[:, 0, :, :]
    classes = jnp.stack([1.0 - x, x], axis=1)                    # (N, 2, H, W)
    probs = jax.nn.softmax(classes, axis=1)
    onehot = jax.nn.one_hot(target, n_classes, axis=1, dtype=jnp.float32)
    inter = (probs * onehot).reshape(N, n_classes, -1).sum(-1)
    union = (probs + onehot - probs * onehot).reshape(N, n_classes, -1).sum(-1)
    w = weight * weight
    loss = (w * inter) / (w * union + 1e-8)
    return -jnp.mean(loss)


if __name__ == "__main__":
    key = jax.random.PRNGKey(0)

    def _check(n, h, w, max_block_elems=_MAX_BLOCK_ELEMS, dtype=jnp.float32):
        k1, k2 = jax.random.split(jax.random.fold_in(key, n * 100003 + h * 131 + w))
        inputs = jax.random.uniform(k1, (n, 1, h, w), dtype=jnp.float32).astype(dtype)
        target = jax.random.randint(k2, (n, h, w), 0, 2, dtype=jnp.int32)
        out = jax.block_until_ready(
            iou_loss(inputs, target, max_block_elems=max_block_elems))
        ref = jax.block_until_ready(iou_loss_ref(inputs.astype(jnp.float32), target))
        if not bool(jnp.allclose(out, ref, rtol=3e-4, atol=1e-5)):
            raise AssertionError(f"mismatch @ {(n, h, w, dtype)}: pallas={out} ref={ref}")

    _check(2, 16, 16)                               # zero-copy (L=256), single chunk
    _check(2, 24, 24)                               # ragged HW -> minimal pad + in-kernel tail mask
    _check(2, 64, 64)                               # zero-copy (L=512), 8-row fold path
    _check(2, 128, 512, max_block_elems=32 * 512)   # multi-chunk + megacore split (n_splits=2)
    _check(1, 200, 200, max_block_elems=32 * 512)   # ragged + multi-chunk + masked last chunk
    _check(2, 128, 128, dtype=jnp.bfloat16)         # bf16 probability map accepted directly
    print("KERNEL_OK")
</pallas_src>

<mosaic_0001>
module attributes {stable_mosaic.version = 11 : i64} {
  func.func @kernel(%arg0: i32, %arg1: i32, %arg2: i32, %arg3: memref<1x1x256xf32, #tpu.memory_space<vmem>>, %arg4: memref<1x1x256xi32, #tpu.memory_space<vmem>>, %arg5: memref<1x1x1x256xf32, #tpu.memory_space<vmem>>, %arg6: memref<1x1x1x256xf32, #tpu.memory_space<vmem>>, %arg7: memref<1x1x1x256xf32, #tpu.memory_space<vmem>>) attributes {dimension_semantics = [#tpu.dimension_semantics<parallel>, #tpu.dimension_semantics<parallel>, #tpu.dimension_semantics<arbitrary>], iteration_bounds = array<i64: 1, 2, 1>, scalar_prefetch = 0 : i64, scratch_operands = 0 : i64, tpu.core_type = #tpu.core_type<tc>, window_params = [{transform_indices = @transform_0, window_bounds = array<i64: 1, 1, 256>}, {transform_indices = @transform_1, window_bounds = array<i64: 1, 1, 256>}, {transform_indices = @transform_2, window_bounds = array<i64: 1, 1, 1, 256>}, {transform_indices = @transform_3, window_bounds = array<i64: 1, 1, 1, 256>}, {transform_indices = @transform_4, window_bounds = array<i64: 1, 1, 1, 256>}]} {
    %c0_i32 = arith.constant 0 : i32
    %0 = arith.cmpi eq, %arg2, %c0_i32 : i32
    %1 = arith.extui %0 : i1 to i32
    %c0_i32_0 = arith.constant 0 : i32
    %2 = arith.cmpi ne, %1, %c0_i32_0 : i32
    scf.if %2 {
      %cst_36 = arith.constant 0.000000e+00 : f32
      %44 = vector.broadcast %cst_36 : f32 to vector<1x1x1x256xf32>
      %c0_37 = arith.constant 0 : index
      %c0_38 = arith.constant 0 : index
      %c0_39 = arith.constant 0 : index
      %c0_40 = arith.constant 0 : index
      %45 = vector.load %arg5[%c0_37, %c0_38, %c0_39, %c0_40] : memref<1x1x1x256xf32, #tpu.memory_space<vmem>>, vector<1x1x1x256xf32>
      tpu.vector_store %arg5[%c0_37, %c0_38, %c0_39, %c0_40], %44 {strides = array<i32>} : memref<1x1x1x256xf32, #tpu.memory_space<vmem>>, vector<1x1x1x256xf32>,
      %cst_41 = arith.constant 0.000000e+00 : f32
      %46 = vector.broadcast %cst_41 : f32 to vector<1x1x1x256xf32>
      %c0_42 = arith.constant 0 : index
      %c0_43 = arith.constant 0 : index
      %c0_44 = arith.constant 0 : index
      %c0_45 = arith.constant 0 : index
      %47 = vector.load %arg6[%c0_42, %c0_43, %c0_44, %c0_45] : memref<1x1x1x256xf32, #tpu.memory_space<vmem>>, vector<1x1x1x256xf32>
      tpu.vector_store %arg6[%c0_42, %c0_43, %c0_44, %c0_45], %46 {strides = array<i32>} : memref<1x1x1x256xf32, #tpu.memory_space<vmem>>, vector<1x1x1x256xf32>,
      %cst_46 = arith.constant 0.000000e+00 : f32
      %48 = vector.broadcast %cst_46 : f32 to vector<1x1x1x256xf32>
      %c0_47 = arith.constant 0 : index
      %c0_48 = arith.constant 0 : index
      %c0_49 = arith.constant 0 : index
      %c0_50 = arith.constant 0 : index
      %49 = vector.load %arg7[%c0_47, %c0_48, %c0_49, %c0_50] : memref<1x1x1x256xf32, #tpu.memory_space<vmem>>, vector<1x1x1x256xf32>
      tpu.vector_store %arg7[%c0_47, %c0_48, %c0_49, %c0_50], %48 {strides = array<i32>} : memref<1x1x1x256xf32, #tpu.memory_space<vmem>>, vector<1x1x1x256xf32>,
    } else {
    }
    %c0 = arith.constant 0 : index
    %c0_1 = arith.constant 0 : index
    %c0_2 = arith.constant 0 : index
    %3 = vector.load %arg3[%c0, %c0_1, %c0_2] : memref<1x1x256xf32, #tpu.memory_space<vmem>>, vector<1x1x256xf32>
    %4 = vector.shape_cast %3 : vector<1x1x256xf32> to vector<1x256xf32>
    %c0_3 = arith.constant 0 : index
    %c0_4 = arith.constant 0 : index
    %c0_5 = arith.constant 0 : index
    %5 = vector.load %arg4[%c0_3, %c0_4, %c0_5] : memref<1x1x256xi32, #tpu.memory_space<vmem>>, vector<1x1x256xi32>
    %6 = vector.shape_cast %5 : vector<1x1x256xi32> to vector<1x256xi32>
    %cst = arith.constant 5.000000e-01 : f32
    %7 = vector.broadcast %cst : f32 to vector<1x256xf32>
    %8 = arith.subf %4, %7 : vector<1x256xf32>
    %9 = math.tanh %8 : vector<1x256xf32>
    %cst_6 = arith.constant 5.000000e-01 : f32
    %10 = vector.broadcast %cst_6 : f32 to vector<1x256xf32>
    %11 = arith.mulf %10, %9 : vector<1x256xf32>
    %cst_7 = arith.constant 5.000000e-01 : f32
    %12 = vector.broadcast %cst_7 : f32 to vector<1x256xf32>
    %13 = arith.addf %11, %12 : vector<1x256xf32>
    %c1_i32 = arith.constant 1 : i32
    %14 = vector.broadcast %c1_i32 : i32 to vector<1x256xi32>
    %15 = arith.cmpi eq, %6, %14 : vector<1x256xi32>
    %16 = arith.extui %15 : vector<1x256xi1> to vector<1x256xi32>
    %17 = arith.sitofp %16 : vector<1x256xi32> to vector<1x256xf32>
    %cst_8 = arith.constant 0.000000e+00 : f32
    %18 = vector.broadcast %cst_8 : f32 to vector<1x256xf32>
    %19 = arith.select %15, %13, %18 : vector<1x256xi1>, vector<1x256xf32>
    %c0_9 = arith.constant 0 : index
    %c0_10 = arith.constant 0 : index
    %c0_11 = arith.constant 0 : index
    %c0_12 = arith.constant 0 : index
    %20 = vector.load %arg5[%c0_9, %c0_10, %c0_11, %c0_12] : memref<1x1x1x256xf32, #tpu.memory_space<vmem>>, vector<1x1x1x256xf32>
    %21 = vector.shape_cast %20 : vector<1x1x1x256xf32> to vector<1x256xf32>
    %cst_13 = arith.constant dense<0.000000e+00> : vector<256xf32>
    %22 = vector.multi_reduction <add>, %13, %cst_13 [0] : vector<1x256xf32> to vector<256xf32>
    %23 = vector.shape_cast %22 : vector<256xf32> to vector<1x256xf32>
    %24 = arith.addf %21, %23 : vector<1x256xf32>
    %c0_14 = arith.constant 0 : index
    %c0_15 = arith.constant 0 : index
    %c0_16 = arith.constant 0 : index
    %c0_17 = arith.constant 0 : index
    %25 = vector.load %arg5[%c0_14, %c0_15, %c0_16, %c0_17] : memref<1x1x1x256xf32, #tpu.memory_space<vmem>>, vector<1x1x1x256xf32>
    %26 = vector.shape_cast %25 : vector<1x1x1x256xf32> to vector<1x256xf32>
    %27 = vector.shape_cast %24 : vector<1x256xf32> to vector<1x1x1x256xf32>
    tpu.vector_store %arg5[%c0_14, %c0_15, %c0_16, %c0_17], %27 {strides = array<i32>} : memref<1x1x1x256xf32, #tpu.memory_space<vmem>>, vector<1x1x1x256xf32>,
    %c0_18 = arith.constant 0 : index
    %c0_19 = arith.constant 0 : index
    %c0_20 = arith.constant 0 : index
    %c0_21 = arith.constant 0 : index
    %28 = vector.load %arg6[%c0_18, %c0_19, %c0_20, %c0_21] : memref<1x1x1x256xf32, #tpu.memory_space<vmem>>, vector<1x1x1x256xf32>
    %29 = vector.shape_cast %28 : vector<1x1x1x256xf32> to vector<1x256xf32>
    %cst_22 = arith.constant dense<0.000000e+00> : vector<256xf32>
    %30 = vector.multi_reduction <add>, %17, %cst_22 [0] : vector<1x256xf32> to vector<256xf32>
    %31 = vector.shape_cast %30 : vector<256xf32> to vector<1x256xf32>
    %32 = arith.addf %29, %31 : vector<1x256xf32>
    %c0_23 = arith.constant 0 : index
    %c0_24 = arith.constant 0 : index
    %c0_25 = arith.constant 0 : index
    %c0_26 = arith.constant 0 : index
    %33 = vector.load %arg6[%c0_23, %c0_24, %c0_25, %c0_26] : memref<1x1x1x256xf32, #tpu.memory_space<vmem>>, vector<1x1x1x256xf32>
    %34 = vector.shape_cast %33 : vector<1x1x1x256xf32> to vector<1x256xf32>
    %35 = vector.shape_cast %32 : vector<1x256xf32> to vector<1x1x1x256xf32>
    tpu.vector_store %arg6[%c0_23, %c0_24, %c0_25, %c0_26], %35 {strides = array<i32>} : memref<1x1x1x256xf32, #tpu.memory_space<vmem>>, vector<1x1x1x256xf32>,
    %c0_27 = arith.constant 0 : index
    %c0_28 = arith.constant 0 : index
    %c0_29 = arith.constant 0 : index
    %c0_30 = arith.constant 0 : index
    %36 = vector.load %arg7[%c0_27, %c0_28, %c0_29, %c0_30] : memref<1x1x1x256xf32, #tpu.memory_space<vmem>>, vector<1x1x1x256xf32>
    %37 = vector.shape_cast %36 : vector<1x1x1x256xf32> to vector<1x256xf32>
    %cst_31 = arith.constant dense<0.000000e+00> : vector<256xf32>
    %38 = vector.multi_reduction <add>, %19, %cst_31 [0] : vector<1x256xf32> to vector<256xf32>
    %39 = vector.shape_cast %38 : vector<256xf32> to vector<1x256xf32>
    %40 = arith.addf %37, %39 : vector<1x256xf32>
    %c0_32 = arith.constant 0 : index
    %c0_33 = arith.constant 0 : index
    %c0_34 = arith.constant 0 : index
    %c0_35 = arith.constant 0 : index
    %41 = vector.load %arg7[%c0_32, %c0_33, %c0_34, %c0_35] : memref<1x1x1x256xf32, #tpu.memory_space<vmem>>, vector<1x1x1x256xf32>
    %42 = vector.shape_cast %41 : vector<1x1x1x256xf32> to vector<1x256xf32>
    %43 = vector.shape_cast %40 : vector<1x256xf32> to vector<1x1x1x256xf32>
    tpu.vector_store %arg7[%c0_32, %c0_33, %c0_34, %c0_35], %43 {strides = array<i32>} : memref<1x1x1x256xf32, #tpu.memory_space<vmem>>, vector<1x1x1x256xf32>,
    return
  }
  func.func @transform_0(%arg0: i32, %arg1: i32, %arg2: i32) -> (i32, i32, i32) {
    %c1_i32 = arith.constant 1 : i32
    %0 = arith.muli %arg0, %c1_i32 : i32
    %1 = arith.addi %0, %arg2 : i32
    %c0_i32 = arith.constant 0 : i32
    %c0_i32_0 = arith.constant 0 : i32
    return %arg1, %1, %c0_i32 : i32, i32, i32
  }
  func.func @transform_1(%arg0: i32, %arg1: i32, %arg2: i32) -> (i32, i32, i32) {
    %c1_i32 = arith.constant 1 : i32
    %0 = arith.muli %arg0, %c1_i32 : i32
    %1 = arith.addi %0, %arg2 : i32
    %c0_i32 = arith.constant 0 : i32
    %c0_i32_0 = arith.constant 0 : i32
    return %arg1, %1, %c0_i32 : i32, i32, i32
  }
  func.func @transform_2(%arg0: i32, %arg1: i32, %arg2: i32) -> (i32, i32, i32, i32) {
    %c0_i32 = arith.constant 0 : i32
    %c0_i32_0 = arith.constant 0 : i32
    %c0_i32_1 = arith.constant 0 : i32
    return %arg0, %arg1, %c0_i32, %c0_i32_0 : i32, i32, i32, i32
  }
  func.func @transform_3(%arg0: i32, %arg1: i32, %arg2: i32) -> (i32, i32, i32, i32) {
    %c0_i32 = arith.constant 0 : i32
    %c0_i32_0 = arith.constant 0 : i32
    %c0_i32_1 = arith.constant 0 : i32
    return %arg0, %arg1, %c0_i32, %c0_i32_0 : i32, i32, i32, i32
  }
  func.func @transform_4(%arg0: i32, %arg1: i32, %arg2: i32) -> (i32, i32, i32, i32) {
    %c0_i32 = arith.constant 0 : i32
    %c0_i32_0 = arith.constant 0 : i32
    %c0_i32_1 = arith.constant 0 : i32
    return %arg0, %arg1, %c0_i32, %c0_i32_0 : i32, i32, i32, i32
  }
}

</mosaic_0001>

<llo_original>
// kernel: tpu_custom_call.1
$region0: #{tpu_custom_call.1}
  #allocation0 [shape = 'u32[]', space=smem, size = 0x4, offset = 0x4, fixed_abs, tag = 'smem constant byte address 0x4 - core index']
  #allocation1 [shape = 'u32[144,128]{1,0:T(1,128)}', space=vmem, size = 0x12000, scoped, tag = 'internal scratch']
  %s0 = inlined_call_operand.hbm [shape: f32[2,1,256], index: 0, kind: input, shape index: {}]
  %s1 = inlined_call_operand.hbm [shape: s32[2,1,256], index: 1, kind: input, shape index: {}]
  %s2 = inlined_call_operand.hbm [shape: f32[1,2,1,256], index: 2, kind: output, shape index: {0}]
  %s3 = inlined_call_operand.hbm [shape: f32[1,2,1,256], index: 3, kind: output, shape index: {1}]
  %s4 = inlined_call_operand.hbm [shape: f32[1,2,1,256], index: 4, kind: output, shape index: {2}]
  %5 = xla_tuple %s2, %s3, %s4
  %s6 = sld [smem:[#allocation0]]
  $region69: #{tpu_custom_call.1} parent=0
    _
  %s8 = ssub.s32 1, %s6
  %s9 = scalar_select 0, %s8, %s6
  $region1: #{tpu_custom_call.1} parent=0
    #allocation2 [shape = 'u8[2048]{0}', space=vmem, size = 0x800, scoped, tag = 'input window, operand 0']
    #allocation3 [shape = 's32[2]{0}', space=sflag, size = 0x8, scoped, tag = 'scoped memory for tpu_custom_call.1']
    #allocation4 [shape = 's32[2]{0}', space=sflag, size = 0x8, scoped, tag = 'scoped memory for tpu_custom_call.1']
    #allocation5 [shape = 'u8[2048]{0}', space=vmem, size = 0x800, scoped, tag = 'input window, operand 1']
    #allocation6 [shape = 's32[2]{0}', space=sflag, size = 0x8, scoped, tag = 'scoped memory for tpu_custom_call.1']
    #allocation7 [shape = 'u8[2048]{0}', space=vmem, size = 0x800, scoped, tag = 'output window, operand 0']
    #allocation8 [shape = 'u8[2048]{0}', space=vmem, size = 0x800, scoped, tag = 'output window, operand 1']
    #allocation9 [shape = 's32[2]{0}', space=sflag, size = 0x8, scoped, tag = 'scoped memory for tpu_custom_call.1']
    #allocation10 [shape = 'u8[2048]{0}', space=vmem, size = 0x800, scoped, tag = 'output window, operand 2']
    %10 = vsyncpa [#allocation3], 0
    %s11 = scalar_lea.sflag [#allocation3], 1
    %12 = vsyncpa %s11, 0
    %13 = vsyncpa [#allocation6], 0
    %s14 = scalar_lea.sflag [#allocation6], 1
    %15 = vsyncpa %s14, 0
    %16 = vsyncpa [#allocation4], 0
    %s17 = scalar_lea.sflag [#allocation4], 1
    %18 = vsyncpa %s17, 0
    %19 = vsyncpa [#allocation9], 0
    %s20 = scalar_lea.sflag [#allocation9], 1
    %21 = vsyncpa %s20, 0
    loop: start=0, step=1, limit=4
    $region2: #{tpu_custom_call.1} parent=1 // loop_pre_header
      _
    $region3: #{tpu_custom_call.1} parent=1 // loop_header
      %s23 = sphi 0, %s27
      %p24 = scmp.ge.s32.totalorder %s23, 4
      %s30 = sphi 0, %s49
      %s31 = sphi 0, %s45
      %s32 = sphi 0, %s41
      %s33 = sphi 0, %s30
      %s34 = sphi 0, %s31
      %s35 = sphi 0, %s32
      %s36 = sphi 0, %s33
      %s37 = sphi 0, %s34
      %s38 = sphi 0, %s35
      %s56 = sphi 0, %s58
      %s59 = sphi 0, %s56
      %s60 = sphi 0, %s59
      %s76 = sphi 0, %s60
      %s86 = sphi 0, %s88
      %s89 = sphi 0, %s86
      %s90 = sphi 0, %s89
      %s106 = sphi 0, %s90
      %s114 = sphi 0, %s116
      %s117 = sphi 0, %s114
      %s118 = sphi 0, %s117
      %s134 = sphi 0, %s118
      %s142 = sphi 0, %s144
      %s145 = sphi 0, %s142
      %s146 = sphi 0, %s145
      %s162 = sphi 0, %s146
      %s170 = sphi 0, %s172
      %s173 = sphi 0, %s170
      %s174 = sphi 0, %s173
      %s190 = sphi 0, %s174
    $region4: #{tpu_custom_call.1} parent=1 // loop_header_branch
      %26 = sbr.rel (%p24) target = $region8
    $region5: #{tpu_custom_call.1} parent=1 // loop_body
      %s28 = ssub.s32 %s23, 1
      %s29 = ssub.s32 %s23, 2
      %s39 = sadd.s32 1, %s32
      %p40 = scmp.ge.s32.totalorder %s39, 1
      %s41 = scalar_select %p40, 0, %s39
      %s42 = sadd.s32 1, %s31
      %s43 = scalar_select %p40, %s42, %s31
      %p44 = scmp.ge.s32.totalorder %s43, 2
      %s45 = scalar_select %p44, 0, %s43
      %s46 = sadd.s32 1, %s30
      %s47 = scalar_select %p44, %s46, %s30
      %p48 = scmp.ge.s32.totalorder %s47, 1
      %s49 = scalar_select %p48, 0, %s47
      %s50 = sadd.s32 %s30, %s32
      %s51 = sadd.s32 %s49, %s41
      %s52 = ssub.s32 %s31, %s45
      %s53 = ssub.s32 %s50, %s51
      %s54 = sor.u32 %s52, %s53
      %p55 = scmp.eq.s32.totalorder %s54, 0
      %s57 = sadd.s32 %s56, 1
      %s58 = scalar_select %p55, %s56, %s57
      %p61 = pneg %p55
      %p62 = scmp.eq.s32.totalorder %s23, 1
      %p63 = por %p61, %p62
      %p64 = scmp.ne.s32.totalorder %s56, %s59
      %p65 = scmp.eq.s32.totalorder %s23, 0
      %p66 = por %p64, %p65
      %p67 = scmp.ne.s32.totalorder %s56, %s59
      %p68 = scmp.eq.s32.totalorder %s28, 1
      %p69 = por %p67, %p68
      %p70 = scmp.ne.s32.totalorder %s59, %s60
      %p71 = scmp.eq.s32.totalorder %s28, 0
      %p72 = por %p70, %p71
      %p73 = scmp.ne.s32.totalorder %s59, %s60
      %p74 = scmp.eq.s32.totalorder %s29, 1
      %p75 = por %p73, %p74
      %p77 = scmp.ne.s32.totalorder %s60, %s76
      %p78 = scmp.eq.s32.totalorder %s29, 0
      %p79 = por %p77, %p78
      %s80 = sadd.s32 %s30, %s32
      %s81 = sadd.s32 %s49, %s41
      %s82 = ssub.s32 %s31, %s45
      %s83 = ssub.s32 %s80, %s81
      %s84 = sor.u32 %s82, %s83
      %p85 = scmp.eq.s32.totalorder %s84, 0
      %s87 = sadd.s32 %s86, 1
      %s88 = scalar_select %p85, %s86, %s87
      %p91 = pneg %p85
      %p92 = scmp.eq.s32.totalorder %s23, 1
      %p93 = por %p91, %p92
      %p94 = scmp.ne.s32.totalorder %s86, %s89
      %p95 = scmp.eq.s32.totalorder %s23, 0
      %p96 = por %p94, %p95
      %p97 = scmp.ne.s32.totalorder %s86, %s89
      %p98 = scmp.eq.s32.totalorder %s28, 1
      %p99 = por %p97, %p98
      %p100 = scmp.ne.s32.totalorder %s89, %s90
      %p101 = scmp.eq.s32.totalorder %s28, 0
      %p102 = por %p100, %p101
      %p103 = scmp.ne.s32.totalorder %s89, %s90
      %p104 = scmp.eq.s32.totalorder %s29, 1
      %p105 = por %p103, %p104
      %p107 = scmp.ne.s32.totalorder %s90, %s106
      %p108 = scmp.eq.s32.totalorder %s29, 0
      %p109 = por %p107, %p108
      %s110 = ssub.s32 %s30, %s49
      %s111 = ssub.s32 %s31, %s45
      %s112 = sor.u32 %s110, %s111
      %p113 = scmp.eq.s32.totalorder %s112, 0
      %s115 = sadd.s32 %s114, 1
      %s116 = scalar_select %p113, %s114, %s115
      %p119 = pneg %p113
      %p120 = scmp.eq.s32.totalorder %s23, 1
      %p121 = por %p119, %p120
      %p122 = scmp.ne.s32.totalorder %s114, %s117
      %p123 = scmp.eq.s32.totalorder %s23, 0
      %p124 = por %p122, %p123
      %p125 = scmp.ne.s32.totalorder %s114, %s117
      %p126 = scmp.eq.s32.totalorder %s28, 1
      %p127 = por %p125, %p126
      %p128 = scmp.ne.s32.totalorder %s117, %s118
      %p129 = scmp.eq.s32.totalorder %s28, 0
      %p130 = por %p128, %p129
      %p131 = scmp.ne.s32.totalorder %s117, %s118
      %p132 = scmp.eq.s32.totalorder %s29, 1
      %p133 = por %p131, %p132
      %p135 = scmp.ne.s32.totalorder %s118, %s134
      %p136 = scmp.eq.s32.totalorder %s29, 0
      %p137 = por %p135, %p136
      %s138 = ssub.s32 %s30, %s49
      %s139 = ssub.s32 %s31, %s45
      %s140 = sor.u32 %s138, %s139
      %p141 = scmp.eq.s32.totalorder %s140, 0
      %s143 = sadd.s32 %s142, 1
      %s144 = scalar_select %p141, %s142, %s143
      %p147 = pneg %p141
      %p148 = scmp.eq.s32.totalorder %s23, 1
      %p149 = por %p147, %p148
      %p150 = scmp.ne.s32.totalorder %s142, %s145
      %p151 = scmp.eq.s32.totalorder %s23, 0
      %p152 = por %p150, %p151
      %p153 = scmp.ne.s32.totalorder %s142, %s145
      %p154 = scmp.eq.s32.totalorder %s28, 1
      %p155 = por %p153, %p154
      %p156 = scmp.ne.s32.totalorder %s145, %s146
      %p157 = scmp.eq.s32.totalorder %s28, 0
      %p158 = por %p156, %p157
      %p159 = scmp.ne.s32.totalorder %s145, %s146
      %p160 = scmp.eq.s32.totalorder %s29, 1
      %p161 = por %p159, %p160
      %p163 = scmp.ne.s32.totalorder %s146, %s162
      %p164 = scmp.eq.s32.totalorder %s29, 0
      %p165 = por %p163, %p164
      %s166 = ssub.s32 %s30, %s49
      %s167 = ssub.s32 %s31, %s45
      %s168 = sor.u32 %s166, %s167
      %p169 = scmp.eq.s32.totalorder %s168, 0
      %s171 = sadd.s32 %s170, 1
      %s172 = scalar_select %p169, %s170, %s171
      %p175 = pneg %p169
      %p176 = scmp.eq.s32.totalorder %s23, 1
      %p177 = por %p175, %p176
      %p178 = scmp.ne.s32.totalorder %s170, %s173
      %p179 = scmp.eq.s32.totalorder %s23, 0
      %p180 = por %p178, %p179
      %p181 = scmp.ne.s32.totalorder %s170, %s173
      %p182 = scmp.eq.s32.totalorder %s28, 1
      %p183 = por %p181, %p182
      %p184 = scmp.ne.s32.totalorder %s173, %s174
      %p185 = scmp.eq.s32.totalorder %s28, 0
      %p186 = por %p184, %p185
      %p187 = scmp.ne.s32.totalorder %s173, %s174
      %p188 = scmp.eq.s32.totalorder %s29, 1
      %p189 = por %p187, %p188
      %p191 = scmp.ne.s32.totalorder %s174, %s190
      %p192 = scmp.eq.s32.totalorder %s29, 0
      %p193 = por %p191, %p192
      %p194 = scmp.le.s32.totalorder 1, %s23
      %p195 = scmp.lt.s32.totalorder %s23, 3
      %p196 = pnand %p194, %p195
      %p197 = pneg %p196
      // Predicated region
      $region9: #{tpu_custom_call.1} parent=5 // pred_check
        _
      $region10: #{tpu_custom_call.1} parent=5 // pred_check_branch
        %199 = sbr.rel (%p196) target = $region12
      $region11: #{tpu_custom_call.1} parent=5 // pred_region
        %s200 = ssub.s32 %s23, 1
      $region12: #{tpu_custom_call.1} parent=5 // pred_fallthru
        _
      %p201 = scmp.lt.s32.totalorder %s23, 2
      // Predicated region
      $region13: #{tpu_custom_call.1} parent=5 // pred_check
        %p202 = pneg %p201
      $region14: #{tpu_custom_call.1} parent=5 // pred_check_branch
        %204 = sbr.rel (%p202) target = $region16
      $region15: #{tpu_custom_call.1} parent=5 // pred_region
        // Predicated region
        $region17: #{tpu_custom_call.1} parent=15 // pred_check
          %p205 = pneg %p66
        $region18: #{tpu_custom_call.1} parent=15 // pred_check_branch
          %207 = sbr.rel (%p205) target = $region20
        $region19: #{tpu_custom_call.1} parent=15 // pred_region
          %s208 = sand.u32 %s56, 1
          %s209 = scalar_lea.sflag [#allocation3], %s208
          %s210 = sand.u32 %s56, 1
          %s211 = smul.addr %s210, 2
          %s212 = scalar_lea.vmem [#allocation2], %s211
          %s213 = sadd.s32 %s30, %s32
          %s215 = ssub.s32 32, 32
          %216 = vsyncadd %s209, %s215
          %s217 = smul.addr %s213, 2
          %s218 = smul.addr %s31, 2
          %s219 = sadd.s32 %s217, %s218
          %s220 = smul.addr %s219, 16
          %s221 = scalar_lea.hbm %s0, %s220
          %s223 = sshll.u32 %s212, 4
          %s224 = int_to_ptr.vmem [resolvable:$true] %s223
          %226 = dma.hbm_to_vmem [thread:$0]  %s221, 32, %s224, %s209
        $region20: #{tpu_custom_call.1} parent=15 // pred_fallthru
          _
        // Predicated region
        $region21: #{tpu_custom_call.1} parent=15 // pred_check
          %p227 = pneg %p96
        $region22: #{tpu_custom_call.1} parent=15 // pred_check_branch
          %229 = sbr.rel (%p227) target = $region24
        $region23: #{tpu_custom_call.1} parent=15 // pred_region
          %s230 = sand.u32 %s86, 1
          %s231 = scalar_lea.sflag [#allocation6], %s230
          %s232 = sand.u32 %s86, 1
          %s233 = smul.addr %s232, 2
          %s234 = scalar_lea.vmem [#allocation5], %s233
          %s235 = sadd.s32 %s30, %s32
          %s237 = ssub.s32 32, 32
          %238 = vsyncadd %s231, %s237
          %s239 = smul.addr %s235, 2
          %s240 = smul.addr %s31, 2
          %s241 = sadd.s32 %s239, %s240
          %s242 = smul.addr %s241, 16
          %s243 = scalar_lea.hbm %s1, %s242
          %s245 = sshll.u32 %s234, 4
          %s246 = int_to_ptr.vmem [resolvable:$true] %s245
          %248 = dma.hbm_to_vmem [thread:$0]  %s243, 32, %s246, %s231
        $region24: #{tpu_custom_call.1} parent=15 // pred_fallthru
          _
      $region16: #{tpu_custom_call.1} parent=5 // pred_fallthru
        _
      %p249 = scmp.le.s32.totalorder 1, %s23
      %p250 = scmp.lt.s32.totalorder %s23, 3
      %p251 = pnand %p249, %p250
      %p252 = pneg %p251
      // Predicated region
      $region25: #{tpu_custom_call.1} parent=5 // pred_check
        _
      $region26: #{tpu_custom_call.1} parent=5 // pred_check_branch
        %254 = sbr.rel (%p251) target = $region28
      $region27: #{tpu_custom_call.1} parent=5 // pred_region
        %s255 = ssub.s32 %s23, 1
        %s256 = sand.u32 %s59, 1
        %s257 = scalar_lea.sflag [#allocation3], %s256
        %s258 = sand.u32 %s59, 1
        %s259 = smul.addr %s258, 2
        %s260 = scalar_lea.vmem [#allocation2], %s259
        // Predicated region
        $region29: #{tpu_custom_call.1} parent=27 // pred_check
          %p261 = pneg %p72
        $region30: #{tpu_custom_call.1} parent=27 // pred_check_branch
          %263 = sbr.rel (%p261) target = $region32
        $region31: #{tpu_custom_call.1} parent=27 // pred_region
          %264 = dma.done %s257, 32
        $region32: #{tpu_custom_call.1} parent=27 // pred_fallthru
          _
        %s265 = sand.u32 %s89, 1
        %s266 = scalar_lea.sflag [#allocation6], %s265
        %s267 = sand.u32 %s89, 1
        %s268 = smul.addr %s267, 2
        %s269 = scalar_lea.vmem [#allocation5], %s268
        // Predicated region
        $region33: #{tpu_custom_call.1} parent=27 // pred_check
          %p270 = pneg %p102
        $region34: #{tpu_custom_call.1} parent=27 // pred_check_branch
          %272 = sbr.rel (%p270) target = $region36
        $region35: #{tpu_custom_call.1} parent=27 // pred_region
          %273 = dma.done %s266, 32
        $region36: #{tpu_custom_call.1} parent=27 // pred_fallthru
          _
        %s274 = sand.u32 %s59, 1
        %s275 = scalar_lea.sflag [#allocation3], %s274
        %s276 = sand.u32 %s59, 1
        %s277 = smul.addr %s276, 2
        %s278 = scalar_lea.vmem [#allocation2], %s277
        %p279 = pneg %p72
        %p280 = pneg %p69
        %s281 = sand.u32 %s89, 1
        %s282 = scalar_lea.sflag [#allocation6], %s281
        %s283 = sand.u32 %s89, 1
        %s284 = smul.addr %s283, 2
        %s285 = scalar_lea.vmem [#allocation5], %s284
        %p286 = pneg %p102
        %p287 = pneg %p99
        %p288 = pneg %p130
        %p289 = pneg %p127
        %s290 = sand.u32 %s117, 1
        %s291 = scalar_lea.sflag [#allocation4], %s290
        %s292 = sand.u32 %s117, 1
        %s293 = smul.addr %s292, 2
        %s294 = scalar_lea.vmem [#allocation7], %s293
        %p295 = pneg %p158
        %p296 = pneg %p155
        %s297 = sand.u32 %s28, 1
        %s298 = scalar_lea.sflag [#allocation9], %s297
        %s299 = sand.u32 %s145, 1
        %s300 = smul.addr %s299, 2
        %s301 = scalar_lea.vmem [#allocation8], %s300
        %p302 = pneg %p186
        %p303 = pneg %p183
        %s304 = sand.u32 %s28, 1
        %s305 = scalar_lea.sflag [#allocation9], %s304
        %s306 = sand.u32 %s173, 1
        %s307 = smul.addr %s306, 2
        %s308 = scalar_lea.vmem [#allocation10], %s307
        %s309 = sadd.s32 %s33, %s35
        %s310 = sadd.s32 %s33, %s35
        %p311 = scmp.eq.s32.totalorder %s35, 0
        // Predicated region
        $region37: #{tpu_custom_call.1} parent=27 // pred_check
          %p312 = pneg %p311
        $region38: #{tpu_custom_call.1} parent=27 // pred_check_branch
          %314 = sbr.rel (%p312) target = $region40
        $region39: #{tpu_custom_call.1} parent=27 // pred_region
          %v315 = vlaneseq
          %vm316 = vcmp.ge.s32.totalorder %v315, 0
          %vm317 = vcmp.lt.s32.totalorder %v315, 256
          %vm318 = vmand %vm316, %vm317
          %319 = vst.msk [vmem:[%s294] sm:$0x3] %vm318, 0.0
          %320 = vst.msk [vmem:[%s301] sm:$0x3] %vm318, 0.0
          %321 = vst.msk [vmem:[%s308] sm:$0x3] %vm318, 0.0
        $region40: #{tpu_custom_call.1} parent=27 // pred_fallthru
          _
        %v322 = vld [vmem:[%s260] sm:$0x3]
        %v323 = vld [vmem:[%s269] sm:$0x3]
        %v324 = vsub.f32 %v322, 0.5
        %v325 = vtanh.pop %v324
        %v326 = vmul.f32 %v325, 0.5
        %v327 = vadd.f32 %v326, 0.5
        %vm328 = vcmp.eq.s32.totalorder %v323, 1
        %v329 = vsel %vm328, 1, 0
        %v330 = vcvt.s32.f32 %v329
        %v331 = vsel %vm328, %v327, 0.0
        %v332 = vld [vmem:[%s294] sm:$0x3]
        %v333 = vadd.f32 %v327, 0.0
        %v334 = vadd.f32 %v332, %v333
        %v335 = vlaneseq
        %vm336 = vcmp.ge.s32.totalorder %v335, 0
        %vm337 = vcmp.lt.s32.totalorder %v335, 256
        %vm338 = vmand %vm336, %vm337
        %339 = vst.msk [vmem:[%s294] sm:$0x3] %vm338, %v334
        %v340 = vld [vmem:[%s301] sm:$0x3]
        %v341 = vadd.f32 %v330, 0.0
        %v342 = vadd.f32 %v340, %v341
        %343 = vst.msk [vmem:[%s301] sm:$0x3] %vm338, %v342
        %v344 = vld [vmem:[%s308] sm:$0x3]
        %v345 = vadd.f32 %v331, 0.0
        %v346 = vadd.f32 %v344, %v345
        %347 = vst.msk [vmem:[%s308] sm:$0x3] %vm338, %v346
        %s348 = sand.u32 %s117, 1
        %s349 = scalar_lea.sflag [#allocation4], %s348
        %s350 = sand.u32 %s117, 1
        %s351 = smul.addr %s350, 2
        %s352 = scalar_lea.vmem [#allocation7], %s351
        %s353 = sand.u32 %s28, 1
        %s354 = scalar_lea.sflag [#allocation9], %s353
        %s355 = sand.u32 %s145, 1
        %s356 = smul.addr %s355, 2
        %s357 = scalar_lea.vmem [#allocation8], %s356
        %s358 = sand.u32 %s28, 1
        %s359 = scalar_lea.sflag [#allocation9], %s358
        %s360 = sand.u32 %s173, 1
        %s361 = smul.addr %s360, 2
        %s362 = scalar_lea.vmem [#allocation10], %s361
        // Predicated region
        $region41: #{tpu_custom_call.1} parent=27 // pred_check
          %p363 = pneg %p127
        $region42: #{tpu_custom_call.1} parent=27 // pred_check_branch
          %365 = sbr.rel (%p363) target = $region44
        $region43: #{tpu_custom_call.1} parent=27 // pred_region
          %s367 = ssub.s32 32, 32
          %368 = vsyncadd %s349, %s367
          %s369 = smul.addr %s34, 2
          %s370 = smul.addr %s33, 4
          %s371 = sadd.s32 %s369, %s370
          %s372 = smul.addr %s371, 16
          %s373 = scalar_lea.hbm %s2, %s372
          %s375 = sshll.u32 %s352, 4
          %s376 = int_to_ptr.vmem [resolvable:$true] %s375
          %378 = dma.vmem_to_hbm [thread:$0]  %s376, 32, %s373, %s349
        $region44: #{tpu_custom_call.1} parent=27 // pred_fallthru
          _
        // Predicated region
        $region45: #{tpu_custom_call.1} parent=27 // pred_check
          %p379 = pneg %p155
        $region46: #{tpu_custom_call.1} parent=27 // pred_check_branch
          %381 = sbr.rel (%p379) target = $region48
        $region47: #{tpu_custom_call.1} parent=27 // pred_region
          %s383 = ssub.s32 32, 32
          %384 = vsyncadd %s354, %s383
          %s385 = smul.addr %s34, 2
          %s386 = smul.addr %s33, 4
          %s387 = sadd.s32 %s385, %s386
          %s388 = smul.addr %s387, 16
          %s389 = scalar_lea.hbm %s3, %s388
          %s391 = sshll.u32 %s357, 4
          %s392 = int_to_ptr.vmem [resolvable:$true] %s391
          %394 = dma.vmem_to_hbm [thread:$0]  %s392, 32, %s389, %s354
        $region48: #{tpu_custom_call.1} parent=27 // pred_fallthru
          _
        // Predicated region
        $region49: #{tpu_custom_call.1} parent=27 // pred_check
          %p395 = pneg %p183
        $region50: #{tpu_custom_call.1} parent=27 // pred_check_branch
          %397 = sbr.rel (%p395) target = $region52
        $region51: #{tpu_custom_call.1} parent=27 // pred_region
          %s399 = ssub.s32 32, 32
          %400 = vsyncadd %s359, %s399
          %s401 = smul.addr %s34, 2
          %s402 = smul.addr %s33, 4
          %s403 = sadd.s32 %s401, %s402
          %s404 = smul.addr %s403, 16
          %s405 = scalar_lea.hbm %s4, %s404
          %s407 = sshll.u32 %s362, 4
          %s408 = int_to_ptr.vmem [resolvable:$true] %s407
          %410 = dma.vmem_to_hbm [thread:$0]  %s408, 32, %s405, %s359
        $region52: #{tpu_custom_call.1} parent=27 // pred_fallthru
          _
      $region28: #{tpu_custom_call.1} parent=5 // pred_fallthru
        _
      %p411 = scmp.le.s32.totalorder 2, %s23
      // Predicated region
      $region53: #{tpu_custom_call.1} parent=5 // pred_check
        %p412 = pneg %p411
      $region54: #{tpu_custom_call.1} parent=5 // pred_check_branch
        %414 = sbr.rel (%p412) target = $region56
      $region55: #{tpu_custom_call.1} parent=5 // pred_region
        %s415 = ssub.s32 %s23, 2
        // Predicated region
        $region57: #{tpu_custom_call.1} parent=55 // pred_check
          %p416 = pneg %p133
        $region58: #{tpu_custom_call.1} parent=55 // pred_check_branch
          %418 = sbr.rel (%p416) target = $region60
        $region59: #{tpu_custom_call.1} parent=55 // pred_region
          %s419 = sand.u32 %s118, 1
          %s420 = scalar_lea.sflag [#allocation4], %s419
          %s421 = sand.u32 %s118, 1
          %s422 = smul.addr %s421, 2
          %s423 = scalar_lea.vmem [#allocation7], %s422
          %424 = dma.done %s420, 32
        $region60: #{tpu_custom_call.1} parent=55 // pred_fallthru
          _
        // Predicated region
        $region61: #{tpu_custom_call.1} parent=55 // pred_check
          %p425 = pneg %p161
        $region62: #{tpu_custom_call.1} parent=55 // pred_check_branch
          %427 = sbr.rel (%p425) target = $region64
        $region63: #{tpu_custom_call.1} parent=55 // pred_region
          %s428 = sand.u32 %s29, 1
          %s429 = scalar_lea.sflag [#allocation9], %s428
          %s430 = sand.u32 %s146, 1
          %s431 = smul.addr %s430, 2
          %s432 = scalar_lea.vmem [#allocation8], %s431
          %433 = dma.done %s429, 32
        $region64: #{tpu_custom_call.1} parent=55 // pred_fallthru
          _
        // Predicated region
        $region65: #{tpu_custom_call.1} parent=55 // pred_check
          %p434 = pneg %p189
        $region66: #{tpu_custom_call.1} parent=55 // pred_check_branch
          %436 = sbr.rel (%p434) target = $region68
        $region67: #{tpu_custom_call.1} parent=55 // pred_region
          %s437 = sand.u32 %s29, 1
          %s438 = scalar_lea.sflag [#allocation9], %s437
          %s439 = sand.u32 %s174, 1
          %s440 = smul.addr %s439, 2
          %s441 = scalar_lea.vmem [#allocation10], %s440
          %442 = dma.done %s438, 32
        $region68: #{tpu_custom_call.1} parent=55 // pred_fallthru
          _
      $region56: #{tpu_custom_call.1} parent=5 // pred_fallthru
        _
    $region6: #{tpu_custom_call.1} parent=1 // loop_footer
      %s27 = sadd.s32 1, %s23
    $region7: #{tpu_custom_call.1} parent=1 // loop_footer_branch
      %22 = sbr.rel target = $region3
    $region8: #{tpu_custom_call.1} parent=1 // loop_exit
      _
    %443 = vsyncpa [#allocation3], 1
    %s444 = scalar_lea.sflag [#allocation3], 1
    %445 = vsyncpa %s444, 1
    %446 = vsyncpa [#allocation6], 1
    %s447 = scalar_lea.sflag [#allocation6], 1
    %448 = vsyncpa %s447, 1
    %449 = vsyncpa [#allocation4], 1
    %s450 = scalar_lea.sflag [#allocation4], 1
    %451 = vsyncpa %s450, 1
    %452 = vsyncpa [#allocation9], 1
    %s453 = scalar_lea.sflag [#allocation9], 1
    %454 = vsyncpa %s453, 1

</llo_original>
